<compile_context>
chip_gen: v7x
topology: tpu7x:2x2x1
jax: 0.10.0
libtpu: 0.0.40
codegen_flags: <defaults>
</compile_context>

<pallas_src>
import functools
import math

import jax
import jax.numpy as jnp
from jax.experimental import pallas as pl
from jax.experimental.pallas import tpu as pltpu


def _gelu_tanh(x):
    # DeepSpeed inference gelu kernel uses the tanh approximation.
    c = 0.7978845608028654  # sqrt(2/pi)
    return 0.5 * x * (1.0 + jnp.tanh(c * (x + 0.044715 * x * x * x)))


def _round_up(a, b):
    return (a + b - 1) // b * b


def _cdiv(a, b):
    return (a + b - 1) // b


def _chip_generation():
    """Best-effort TPU generation from device_kind (5 / 6 / 7 / None)."""
    try:
        kind = jax.devices()[0].device_kind.lower()
    except Exception:
        return None
    if "v7" in kind or "7x" in kind:
        return 7
    if "v6" in kind:
        return 6
    if "v5" in kind:
        return 5
    return None


def _vmem_capacity_bytes(gen):
    try:
        info = pltpu.get_tpu_info()
        cap = int(getattr(info, "vmem_capacity_bytes", 0) or 0)
        if cap > 0:
            return cap
    except Exception:
        pass
    # Conservative fallbacks: 128 MiB on v5e/v6e, 64 MiB otherwise (v7x / unknown).
    return (128 if gen in (5, 6) else 64) * 1024 * 1024


def moe_mlp_kernel(x_ref, w1_ref, b1_ref, w2_ref, b2_ref, o_ref, acc_ref,
                   *, gelu_dtype):
    # x_ref:  (tm, H)     token tile (resident across the I axis)
    # w1_ref: (H, ti)     chunk of inter_w columns (streamed per j-step)
    # b1_ref: (n_j, ti)   full inter_b, reshaped; VMEM-resident, sliced in-kernel
    # w2_ref: (ti, H)     chunk of output_w rows (streamed per j-step)
    # b2_ref: (1, H)      output_b (resident; folded into the accumulator init)
    # o_ref:  (tm, H)     output tile (same block across the I axis)
    # acc_ref:(tm, H)     f32 accumulator scratch
    j = pl.program_id(1)

    @pl.when(j == 0)
    def _init():
        # Fold the output bias into the accumulator init: epilogue is a pure cast.
        acc_ref[...] = jnp.broadcast_to(
            b2_ref[...].astype(jnp.float32), acc_ref.shape)

    # First matmul: native-dtype operands on the MXU, f32 accumulation.
    h = jnp.dot(x_ref[...], w1_ref[...], preferred_element_type=jnp.float32)

    # Bias chunk for this j-step (resident in VMEM, no per-step DMA).
    b1_row = b1_ref[pl.ds(j, 1), :]
    h = _gelu_tanh(h.astype(gelu_dtype) + b1_row.astype(gelu_dtype))

    # Second matmul: accumulate this I-chunk's contribution in f32.
    acc_ref[...] += jnp.dot(h.astype(w2_ref.dtype), w2_ref[...],
                            preferred_element_type=jnp.float32)

    @pl.when(j == pl.num_programs(1) - 1)
    def _finalize():
        o_ref[...] = acc_ref[...].astype(o_ref.dtype)


def deepscale_moe_mlp(x, inter_w, inter_b, output_w, output_b, *,
                      tm=None, ti=None):
    """x: [batch, seq, hidden] -> [batch, seq, hidden].

    tm: token tile (multiple of 8).  ti: intermediate-dim tile (multiple of 128).
    Defaults are chosen per TPU generation and auto-shrunk to fit VMEM.
    """
    B, S, H = x.shape
    Hw, I = inter_w.shape
    assert Hw == H
    M = B * S

    ib = jnp.dtype(x.dtype).itemsize
    gen = _chip_generation()
    vmem_cap = _vmem_capacity_bytes(gen)
    budget = int(0.8 * vmem_cap)

    # Per-generation tile defaults (roofline: per-j-step intensity == tm FLOP/byte).
    if tm is None:
        tm = {5: 384, 6: 768, 7: 512}.get(gen, 512)
    if ti is None:
        ti = 256
    assert tm % 8 == 0 and ti % 128 == 0

    # gelu in bf16 only where the VPU/EUP support it (v6e / v7x) and inputs are bf16.
    gelu_dtype = (jnp.bfloat16
                  if (x.dtype == jnp.bfloat16 and gen in (6, 7))
                  else jnp.float32)
    gelu_b = jnp.dtype(gelu_dtype).itemsize

    # --- token tile -----------------------------------------------------------
    tm_eff = max(8, min(tm, _round_up(M, 8)))
    # v7x has 2 TensorCores: make sure the "parallel" token axis has >= 2 programs.
    if gen == 7 and M > 8 and _round_up(M, tm_eff) == tm_eff:
        tm_eff = _round_up((M + 1) // 2, 8)

    # --- intermediate tile ----------------------------------------------------
    ti_eff = min(ti, I)           # full extent if I is small (single j-step)
    # Keep W1 chunk DMA segments reasonably sized: >=256 at 2-byte, >=128 at 4-byte.
    min_ti = 256 if ib <= 2 else 128

    def est(tm_, ti_):
        nj_ = _cdiv(I, ti_)
        return (4 * tm_ * H * ib            # x + out tiles, double-buffered
                + 4 * H * ti_ * ib          # W1 + W2 chunks, double-buffered
                + 2 * nj_ * ti_ * ib        # inter_b resident
                + 2 * H * ib                # output_b resident
                + tm_ * H * 4               # f32 accumulator scratch
                + tm_ * ti_ * (4 + gelu_b)) # live h / gelu intermediates

    # Shrink tiles until the footprint fits the generation-aware budget.
    while est(tm_eff, ti_eff) > budget:
        if ti_eff > min_ti and ti_eff >= 256:
            ti_eff = max(min_ti, (ti_eff // 2) // 128 * 128)
        elif tm_eff > 64:
            tm_eff = max(64, _round_up(tm_eff // 2, 8))
        else:
            break

    ti_eff = min(ti_eff, I)
    Ip = _round_up(I, ti_eff)
    n_j = Ip // ti_eff
    Mp = _round_up(M, tm_eff)
    n_i = Mp // tm_eff

    # --- padding ---------------------------------------------------------------
    x2d = x.reshape(M, H)
    if Mp != M:
        # Padded token rows compute gelu(b1)@W2 + b2 (garbage) — sliced off below.
        x2d = jnp.pad(x2d, ((0, Mp - M), (0, 0)))

    w1 = inter_w
    b1 = inter_b.reshape(1, I)
    w2 = output_w
    if Ip != I:
        # Zero-padded W2 rows contribute nothing, so this padding is exact.
        w1 = jnp.pad(w1, ((0, 0), (0, Ip - I)))
        b1 = jnp.pad(b1, ((0, 0), (0, Ip - I)))
        w2 = jnp.pad(w2, ((0, Ip - I), (0, 0)))
    b1 = b1.reshape(n_j, ti_eff)
    b2 = output_b.reshape(1, H)

    # --- VMEM limit + cost estimate --------------------------------------------
    e = est(tm_eff, ti_eff)
    vmem_limit = int(min(max(int(1.25 * e), 32 * 1024 * 1024),
                         int(0.9 * vmem_cap)))

    cost = pl.CostEstimate(
        flops=int(4 * Mp * H * Ip),                 # two matmuls
        transcendentals=int(Mp * Ip),               # one tanh per gelu element
        bytes_accessed=int(n_i * 2 * H * Ip * ib    # W1 + W2 streamed per token tile
                           + 2 * Mp * H * ib        # x in + out
                           + (Ip + H) * ib),        # biases
    )

    kernel = functools.partial(moe_mlp_kernel, gelu_dtype=gelu_dtype)

    out2d = pl.pallas_call(
        kernel,
        out_shape=jax.ShapeDtypeStruct((Mp, H), x.dtype),
        grid_spec=pltpu.PrefetchScalarGridSpec(
            num_scalar_prefetch=0,
            grid=(n_i, n_j),
            in_specs=[
                pl.BlockSpec((tm_eff, H), lambda i, j: (i, 0)),    # x tile
                pl.BlockSpec((H, ti_eff), lambda i, j: (0, j)),    # inter_w chunk
                pl.BlockSpec((n_j, ti_eff), lambda i, j: (0, 0)),  # inter_b (resident)
                pl.BlockSpec((ti_eff, H), lambda i, j: (j, 0)),    # output_w chunk
                pl.BlockSpec((1, H), lambda i, j: (0, 0)),         # output_b (resident)
            ],
            out_specs=pl.BlockSpec((tm_eff, H), lambda i, j: (i, 0)),
            scratch_shapes=[pltpu.VMEM((tm_eff, H), jnp.float32)],
        ),
        compiler_params=pltpu.CompilerParams(
            dimension_semantics=("parallel", "arbitrary"),
            vmem_limit_bytes=vmem_limit,
        ),
        cost_estimate=cost,
    )(x2d, w1, b1, w2, b2)

    if Mp != M:
        out2d = out2d[:M]
    return out2d.reshape(B, S, H)


def reference(x, inter_w, inter_b, output_w, output_b):
    h = jnp.einsum("bsh,hi->bsi", x.astype(jnp.float32),
                   inter_w.astype(jnp.float32),
                   precision=jax.lax.Precision.HIGHEST) + inter_b
    h = _gelu_tanh(h)
    o = jnp.einsum("bsi,ih->bsh", h, output_w.astype(jnp.float32),
                   precision=jax.lax.Precision.HIGHEST) + output_b
    return o.astype(x.dtype)


if __name__ == "__main__":
    # Small shapes consistent with the module: hidden_size=32, intermediate=128.
    batch, seq, hidden = 2, 8, 32
    interm = 4 * hidden

    key = jax.random.PRNGKey(0)
    k_x, k_w1, k_b1, k_w2, k_b2 = jax.random.split(key, 5)

    x = jax.random.normal(k_x, (batch, seq, hidden), dtype=jnp.float32)
    inter_w = (jax.random.normal(k_w1, (hidden, interm), dtype=jnp.float32)
               / math.sqrt(hidden))
    inter_b = jax.random.normal(k_b1, (interm,), dtype=jnp.float32) * 0.02
    output_w = (jax.random.normal(k_w2, (interm, hidden), dtype=jnp.float32)
                / math.sqrt(interm))
    output_b = jax.random.normal(k_b2, (hidden,), dtype=jnp.float32) * 0.02

    out = deepscale_moe_mlp(x, inter_w, inter_b, output_w, output_b)
    out = jax.block_until_ready(out)

    ref = reference(x, inter_w, inter_b, output_w, output_b)
    assert out.shape == (batch, seq, hidden)
    assert jnp.allclose(out, ref, atol=1e-4, rtol=1e-4), (
        float(jnp.max(jnp.abs(out - ref))))

    print("KERNEL_OK")
</pallas_src>

<mosaic_0001>
module attributes {stable_mosaic.version = 11 : i64} {
  func.func @moe_mlp_kernel(%arg0: i32, %arg1: i32, %arg2: memref<16x32xf32, #tpu.memory_space<vmem>>, %arg3: memref<32x128xf32, #tpu.memory_space<vmem>>, %arg4: memref<1x128xf32, #tpu.memory_space<vmem>>, %arg5: memref<128x32xf32, #tpu.memory_space<vmem>>, %arg6: memref<1x32xf32, #tpu.memory_space<vmem>>, %arg7: memref<16x32xf32, #tpu.memory_space<vmem>>, %arg8: memref<16x32xf32, #tpu.memory_space<vmem>>) attributes {dimension_semantics = [#tpu.dimension_semantics<parallel>, #tpu.dimension_semantics<arbitrary>], iteration_bounds = array<i64: 1, 1>, scalar_prefetch = 0 : i64, scratch_operands = 1 : i64, tpu.core_type = #tpu.core_type<tc>, window_params = [{transform_indices = @transform_0, window_bounds = array<i64: 16, 32>}, {transform_indices = @transform_1, window_bounds = array<i64: 32, 128>}, {pipeline_mode = #tpu.pipeline_mode<synchronous>, transform_indices = @transform_2, window_bounds = array<i64: 1, 128>}, {transform_indices = @transform_3, window_bounds = array<i64: 128, 32>}, {pipeline_mode = #tpu.pipeline_mode<synchronous>, transform_indices = @transform_4, window_bounds = array<i64: 1, 32>}, {transform_indices = @transform_5, window_bounds = array<i64: 16, 32>}]} {
    %c0_i32 = arith.constant 0 : i32
    %0 = arith.cmpi eq, %arg1, %c0_i32 : i32
    %1 = arith.extui %0 : i1 to i32
    %c0_i32_0 = arith.constant 0 : i32
    %2 = arith.cmpi ne, %1, %c0_i32_0 : i32
    scf.if %2 {
      %c0_18 = arith.constant 0 : index
      %c0_19 = arith.constant 0 : index
      %31 = vector.load %arg6[%c0_18, %c0_19] : memref<1x32xf32, #tpu.memory_space<vmem>>, vector<1x32xf32>
      %32 = vector.shape_cast %31 : vector<1x32xf32> to vector<1x32xf32>
      %33 = vector.broadcast %32 : vector<1x32xf32> to vector<16x32xf32>
      %c0_20 = arith.constant 0 : index
      %c0_21 = arith.constant 0 : index
      %34 = vector.load %arg8[%c0_20, %c0_21] : memref<16x32xf32, #tpu.memory_space<vmem>>, vector<16x32xf32>
      tpu.vector_store %arg8[%c0_20, %c0_21], %33 {strides = array<i32>} : memref<16x32xf32, #tpu.memory_space<vmem>>, vector<16x32xf32>,
    } else {
    }
    %c0 = arith.constant 0 : index
    %c0_1 = arith.constant 0 : index
    %3 = vector.load %arg2[%c0, %c0_1] : memref<16x32xf32, #tpu.memory_space<vmem>>, vector<16x32xf32>
    %c0_2 = arith.constant 0 : index
    %c0_3 = arith.constant 0 : index
    %4 = vector.load %arg3[%c0_2, %c0_3] : memref<32x128xf32, #tpu.memory_space<vmem>>, vector<32x128xf32>
    %cst = arith.constant dense<0.000000e+00> : vector<16x128xf32>
    %5 = tpu.matmul %3, %4, %cst {dimension_numbers = #tpu.dot_dimension_numbers<[1], [0], [0], [1], [0, 0, 1, 1], [], []>} : vector<16x32xf32>, vector<32x128xf32>, vector<16x128xf32> -> vector<16x128xf32>
    %6 = arith.index_cast %arg1 : i32 to index
    %c0_4 = arith.constant 0 : index
    %7 = vector.load %arg4[%6, %c0_4] : memref<1x128xf32, #tpu.memory_space<vmem>>, vector<1x128xf32>
    %8 = vector.broadcast %7 : vector<1x128xf32> to vector<16x128xf32>
    %9 = arith.addf %5, %8 : vector<16x128xf32>
    %cst_5 = arith.constant 5.000000e-01 : f32
    %10 = vector.broadcast %cst_5 : f32 to vector<16x128xf32>
    %11 = arith.mulf %10, %9 : vector<16x128xf32>
    %cst_6 = arith.constant 4.471500e-02 : f32
    %12 = vector.broadcast %cst_6 : f32 to vector<16x128xf32>
    %13 = arith.mulf %12, %9 : vector<16x128xf32>
    %14 = arith.mulf %13, %9 : vector<16x128xf32>
    %15 = arith.mulf %14, %9 : vector<16x128xf32>
    %16 = arith.addf %9, %15 : vector<16x128xf32>
    %cst_7 = arith.constant 0.797884583 : f32
    %17 = vector.broadcast %cst_7 : f32 to vector<16x128xf32>
    %18 = arith.mulf %17, %16 : vector<16x128xf32>
    %19 = math.tanh %18 : vector<16x128xf32>
    %cst_8 = arith.constant 1.000000e+00 : f32
    %20 = vector.broadcast %cst_8 : f32 to vector<16x128xf32>
    %21 = arith.addf %20, %19 : vector<16x128xf32>
    %22 = arith.mulf %11, %21 : vector<16x128xf32>
    %c0_9 = arith.constant 0 : index
    %c0_10 = arith.constant 0 : index
    %23 = vector.load %arg8[%c0_9, %c0_10] : memref<16x32xf32, #tpu.memory_space<vmem>>, vector<16x32xf32>
    %c0_11 = arith.constant 0 : index
    %c0_12 = arith.constant 0 : index
    %24 = vector.load %arg5[%c0_11, %c0_12] : memref<128x32xf32, #tpu.memory_space<vmem>>, vector<128x32xf32>
    %cst_13 = arith.constant dense<0.000000e+00> : vector<16x32xf32>
    %25 = tpu.matmul %22, %24, %cst_13 {dimension_numbers = #tpu.dot_dimension_numbers<[1], [0], [0], [1], [0, 0, 1, 1], [], []>} : vector<16x128xf32>, vector<128x32xf32>, vector<16x32xf32> -> vector<16x32xf32>
    %26 = arith.addf %23, %25 : vector<16x32xf32>
    %c0_14 = arith.constant 0 : index
    %c0_15 = arith.constant 0 : index
    %27 = vector.load %arg8[%c0_14, %c0_15] : memref<16x32xf32, #tpu.memory_space<vmem>>, vector<16x32xf32>
    tpu.vector_store %arg8[%c0_14, %c0_15], %26 {strides = array<i32>} : memref<16x32xf32, #tpu.memory_space<vmem>>, vector<16x32xf32>,
    %c0_i32_16 = arith.constant 0 : i32
    %28 = arith.cmpi eq, %arg1, %c0_i32_16 : i32
    %29 = arith.extui %28 : i1 to i32
    %c0_i32_17 = arith.constant 0 : i32
    %30 = arith.cmpi ne, %29, %c0_i32_17 : i32
    scf.if %30 {
      %c0_18 = arith.constant 0 : index
      %c0_19 = arith.constant 0 : index
      %31 = vector.load %arg8[%c0_18, %c0_19] : memref<16x32xf32, #tpu.memory_space<vmem>>, vector<16x32xf32>
      %c0_20 = arith.constant 0 : index
      %c0_21 = arith.constant 0 : index
      %32 = vector.load %arg7[%c0_20, %c0_21] : memref<16x32xf32, #tpu.memory_space<vmem>>, vector<16x32xf32>
      tpu.vector_store %arg7[%c0_20, %c0_21], %31 {strides = array<i32>} : memref<16x32xf32, #tpu.memory_space<vmem>>, vector<16x32xf32>,
    } else {
    }
    return
  }
  func.func @transform_0(%arg0: i32, %arg1: i32) -> (i32, i32) {
    %c0_i32 = arith.constant 0 : i32
    %c0_i32_0 = arith.constant 0 : i32
    return %arg0, %c0_i32 : i32, i32
  }
  func.func @transform_1(%arg0: i32, %arg1: i32) -> (i32, i32) {
    %c0_i32 = arith.constant 0 : i32
    %c0_i32_0 = arith.constant 0 : i32
    return %c0_i32, %arg1 : i32, i32
  }
  func.func @transform_2(%arg0: i32, %arg1: i32) -> (i32, i32) {
    %c0_i32 = arith.constant 0 : i32
    %c0_i32_0 = arith.constant 0 : i32
    %c0_i32_1 = arith.constant 0 : i32
    return %c0_i32, %c0_i32_0 : i32, i32
  }
  func.func @transform_3(%arg0: i32, %arg1: i32) -> (i32, i32) {
    %c0_i32 = arith.constant 0 : i32
    %c0_i32_0 = arith.constant 0 : i32
    return %arg1, %c0_i32 : i32, i32
  }
  func.func @transform_4(%arg0: i32, %arg1: i32) -> (i32, i32) {
    %c0_i32 = arith.constant 0 : i32
    %c0_i32_0 = arith.constant 0 : i32
    %c0_i32_1 = arith.constant 0 : i32
    return %c0_i32, %c0_i32_0 : i32, i32
  }
  func.func @transform_5(%arg0: i32, %arg1: i32) -> (i32, i32) {
    %c0_i32 = arith.constant 0 : i32
    %c0_i32_0 = arith.constant 0 : i32
    return %arg0, %c0_i32 : i32, i32
  }
}

</mosaic_0001>

<llo_original>
// kernel: tpu_custom_call.1
$region0: #{tpu_custom_call.1}
  #allocation0 [shape = 'u32[]', space=smem, size = 0x4, offset = 0x4, fixed_abs, tag = 'smem constant byte address 0x4 - core index']
  #allocation1 [shape = 'u32[144,128]{1,0:T(1,128)}', space=vmem, size = 0x12000, scoped, tag = 'internal scratch']
  #allocation2 [shape = 'f32[16,32]{1,0:T(8,128)}', space=vmem, size = 0x2000, scoped, tag = 'scratch operand']
  %s0 = inlined_call_operand.vmem [shape: f32[16,32], index: 0, kind: input, shape index: {}]
  %s1 = inlined_call_operand.vmem [shape: f32[32,128], index: 1, kind: input, shape index: {}]
  %s2 = inlined_call_operand.vmem [shape: f32[1,128], index: 2, kind: input, shape index: {}]
  %s3 = inlined_call_operand.vmem [shape: f32[128,32], index: 3, kind: input, shape index: {}]
  %s4 = inlined_call_operand.vmem [shape: f32[1,32], index: 4, kind: input, shape index: {}]
  %s5 = inlined_call_operand.hbm [shape: f32[16,32], index: 5, kind: output, shape index: {}]
  %s6 = sld [smem:[#allocation0]]
  $region38: #{tpu_custom_call.1} parent=0
    _
  %s8 = ssub.s32 1, %s6
  %s9 = scalar_select 0, %s8, %s6
  $region1: #{tpu_custom_call.1} parent=0
    #allocation3 [shape = 'u8[8192]{0}', space=vmem, size = 0x2000, scoped, tag = 'output window, operand 0, single buffered']
    #allocation4 [shape = 's32[1]{0}', space=sflag, size = 0x4, scoped, tag = 'scoped memory for tpu_custom_call.1']
    %10 = vsyncpa [#allocation4], 0
    // Predicated region
    $region2: #{tpu_custom_call.1} parent=1 // pred_check
      _
    $region3: #{tpu_custom_call.1} parent=1 // pred_check_branch
      %12 = sbr.rel (0) target = $region5
    $region4: #{tpu_custom_call.1} parent=1 // pred_region
      _
    $region5: #{tpu_custom_call.1} parent=1 // pred_fallthru
      _
    // Predicated region
    $region6: #{tpu_custom_call.1} parent=1 // pred_check
      _
    $region7: #{tpu_custom_call.1} parent=1 // pred_check_branch
      %14 = sbr.rel (0) target = $region9
    $region8: #{tpu_custom_call.1} parent=1 // pred_region
      _
    $region9: #{tpu_custom_call.1} parent=1 // pred_fallthru
      _
    // Predicated region
    $region10: #{tpu_custom_call.1} parent=1 // pred_check
      _
    $region11: #{tpu_custom_call.1} parent=1 // pred_check_branch
      %16 = sbr.rel (0) target = $region13
    $region12: #{tpu_custom_call.1} parent=1 // pred_region
      _
    $region13: #{tpu_custom_call.1} parent=1 // pred_fallthru
      _
    // Predicated region
    $region14: #{tpu_custom_call.1} parent=1 // pred_check
      _
    $region15: #{tpu_custom_call.1} parent=1 // pred_check_branch
      %18 = sbr.rel (0) target = $region17
    $region16: #{tpu_custom_call.1} parent=1 // pred_region
      _
    $region17: #{tpu_custom_call.1} parent=1 // pred_fallthru
      _
    // Predicated region
    $region18: #{tpu_custom_call.1} parent=1 // pred_check
      _
    $region19: #{tpu_custom_call.1} parent=1 // pred_check_branch
      %20 = sbr.rel (0) target = $region21
    $region20: #{tpu_custom_call.1} parent=1 // pred_region
      _
    $region21: #{tpu_custom_call.1} parent=1 // pred_fallthru
      _
    %p21 = scmp.eq.s32.totalorder 0, 0
    // Predicated region
    $region22: #{tpu_custom_call.1} parent=1 // pred_check
      %p22 = pneg %p21
    $region23: #{tpu_custom_call.1} parent=1 // pred_check_branch
      %24 = sbr.rel (%p22) target = $region25
    $region24: #{tpu_custom_call.1} parent=1 // pred_region
      %v25 = vld [vmem:[%s4] sm:$0x1]
      %v27 = vlaneseq
      %v28 = vshrl.u32 %v27, 7
      %v29 = vsub.s32 0, %v28
      %v30 = vrot.slane %v25, %v29
      %vm32 = vcmask 261120
      %33 = vst.msk [vmem:[#allocation2] sm:$0xff] %vm32, %v30
      %34 = vst.msk [vmem:[#allocation2 + $0x8] sm:$0xff] %vm32, %v30
    $region25: #{tpu_custom_call.1} parent=1 // pred_fallthru
      _
    %v35 = vld [vmem:[%s0] sm:$0xff]
    %v36 = vld [vmem:[%s0 + $0x8] sm:$0xff]
    %v37 = vld [vmem:[%s1] sm:$0xff]
    %v38 = vld [vmem:[%s1 + $0x8] sm:$0xff]
    %v39 = vld [vmem:[%s1 + $0x10] sm:$0xff]
    %v40 = vld [vmem:[%s1 + $0x18] sm:$0xff]
    %v41 = vld [vmem:[%s2] sm:$0x1]
    %v43 = vlaneseq
    %v44 = vshrl.u32 %v43, 7
    %v45 = vsub.s32 0, %v44
    %v46 = vrot.slane %v41, %v45
    %vm48 = vcmask 261120
    %v50 = vsel %vm48, %v35, 0
    %v53 = vsel %vm48, %v36, 0
    %55 = vmatprep.subr.mxu0 0.0
    %56 = vmatpush1.msra.mxu0 %v37
    %57 = vmatprep.subr.mxu0 0.0
    %58 = vmatpush1.msra.mxu0 %v38
    %59 = vmatprep.subr.mxu0 0.0
    %60 = vmatpush1.msra.mxu0 %v39
    %61 = vmatprep.subr.mxu0 0.0
    %62 = vmatpush1.msra.mxu0 %v40
    %63 = vmatprep.subr.mxu0 0.0
    %64 = vmatpush1.msra.mxu0 0.0
    %65 = vmatprep.subr.mxu0 0.0
    %66 = vmatpush1.msra.mxu0 0.0
    %67 = vmatprep.subr.mxu0 0.0
    %68 = vmatpush1.msra.mxu0 0.0
    %69 = vmatprep.subr.mxu0 0.0
    %70 = vmatpush1.msra.mxu0 0.0
    %71 = vmatprep.subr.mxu0 0.0
    %72 = vmatpush1.msra.mxu0 0.0
    %73 = vmatprep.subr.mxu0 0.0
    %74 = vmatpush1.msra.mxu0 0.0
    %75 = vmatprep.subr.mxu0 0.0
    %76 = vmatpush1.msra.mxu0 0.0
    %77 = vmatprep.subr.mxu0 0.0
    %78 = vmatpush1.msra.mxu0 0.0
    %79 = vmatprep.subr.mxu0 0.0
    %80 = vmatpush1.msra.mxu0 0.0
    %81 = vmatprep.subr.mxu0 0.0
    %82 = vmatpush1.msra.mxu0 0.0
    %83 = vmatprep.subr.mxu0 0.0
    %84 = vmatpush1.msra.mxu0 0.0
    %85 = vmatprep.subr.mxu0 0.0
    %86 = vmatpush1.msra.mxu0 0.0
    %87 = vmatprep.subr.mxu0 0.0
    %88 = vmatpush1.msra.mxu0 0.0
    %89 = vmatprep.subr.mxu0 0.0
    %90 = vmatpush1.msra.mxu0 0.0
    %91 = vmatprep.subr.mxu0 0.0
    %92 = vmatpush1.msra.mxu0 0.0
    %93 = vmatprep.subr.mxu0 0.0
    %94 = vmatpush1.msra.mxu0 0.0
    %95 = vmatprep.subr.mxu0 0.0
    %96 = vmatpush1.msra.mxu0 0.0
    %97 = vmatprep.subr.mxu0 0.0
    %98 = vmatpush1.msra.mxu0 0.0
    %99 = vmatprep.subr.mxu0 0.0
    %100 = vmatpush1.msra.mxu0 0.0
    %101 = vmatprep.subr.mxu0 0.0
    %102 = vmatpush1.msra.mxu0 0.0
    %103 = vmatprep.subr.mxu0 0.0
    %104 = vmatpush1.msra.mxu0 0.0
    %105 = vmatprep.subr.mxu0 0.0
    %106 = vmatpush1.msra.mxu0 0.0
    %107 = vmatprep.subr.mxu0 0.0
    %108 = vmatpush1.msra.mxu0 0.0
    %109 = vmatprep.subr.mxu0 0.0
    %110 = vmatpush1.msra.mxu0 0.0
    %111 = vmatprep.subr.mxu0 0.0
    %112 = vmatpush1.msra.mxu0 0.0
    %113 = vmatprep.subr.mxu0 0.0
    %114 = vmatpush1.msra.mxu0 0.0
    %115 = vmatprep.subr.mxu0 0.0
    %116 = vmatpush1.msra.mxu0 0.0
    %117 = vmatprep.subr.mxu0 0.0
    %118 = vmatpush1.msra.mxu0 0.0
    %119 = vmatprep.mubr.f32.mxu0 0.0
    %120 = vmatmul.mubr.f32.gmra.mrb[0].mxu0 %v50
    %v121 = vpop.f32.mrb[0].mxu0
    %v122 = vadd.f32 %v46, %v121
    %v123 = vpop.f32.mrb[0].mxu0
    %124 = vmatprep.mubr.f32.mxu0 0.0
    %125 = vmatmul.mubr.f32.gmra.mrb[0].mxu0 %v53
    %v126 = vpop.f32.mrb[0].mxu0
    %v127 = vadd.f32 %v46, %v126
    %v128 = vpop.f32.mrb[0].mxu0
    %129 = vdwg.mxu0
    %v130 = vmul.f32 %v122, 0.5
    %v131 = vmul.f32 %v127, 0.5
    %v132 = vmul.f32 %v122, 0.044715
    %v133 = vmul.f32 %v127, 0.044715
    %v134 = vmul.f32 %v132, %v122
    %v135 = vmul.f32 %v133, %v127
    %v136 = vmul.f32 %v134, %v122
    %v137 = vmul.f32 %v135, %v127
    %v138 = vadd.f32 %v122, %v136
    %v139 = vadd.f32 %v127, %v137
    %v140 = vmul.f32 %v138, 0.7978846
    %v141 = vmul.f32 %v139, 0.7978846
    %v142 = vtanh.pop %v140
    %v143 = vtanh.pop %v141
    %v144 = vadd.f32 %v142, 1.0
    %v145 = vadd.f32 %v143, 1.0
    %v146 = vmul.f32 %v130, %v144
    %v147 = vmul.f32 %v131, %v145
    %v148 = vld [vmem:[#allocation2] sm:$0xff]
    %v149 = vld [vmem:[#allocation2 + $0x8] sm:$0xff]
    %v150 = vld [vmem:[%s3] sm:$0xff]
    %v151 = vld [vmem:[%s3 + $0x8] sm:$0xff]
    %v152 = vld [vmem:[%s3 + $0x10] sm:$0xff]
    %v153 = vld [vmem:[%s3 + $0x18] sm:$0xff]
    %v154 = vld [vmem:[%s3 + $0x20] sm:$0xff]
    %v155 = vld [vmem:[%s3 + $0x28] sm:$0xff]
    %v156 = vld [vmem:[%s3 + $0x30] sm:$0xff]
    %v157 = vld [vmem:[%s3 + $0x38] sm:$0xff]
    %v158 = vld [vmem:[%s3 + $0x40] sm:$0xff]
    %v159 = vld [vmem:[%s3 + $0x48] sm:$0xff]
    %v160 = vld [vmem:[%s3 + $0x50] sm:$0xff]
    %v161 = vld [vmem:[%s3 + $0x58] sm:$0xff]
    %v162 = vld [vmem:[%s3 + $0x60] sm:$0xff]
    %v163 = vld [vmem:[%s3 + $0x68] sm:$0xff]
    %v164 = vld [vmem:[%s3 + $0x70] sm:$0xff]
    %v165 = vld [vmem:[%s3 + $0x78] sm:$0xff]
    %166 = vmatprep.subr.mxu0 0.0
    %167 = vmatpush1.msra.mxu0 %v150
    %168 = vmatprep.subr.mxu0 0.0
    %169 = vmatpush1.msra.mxu0 %v151
    %170 = vmatprep.subr.mxu0 0.0
    %171 = vmatpush1.msra.mxu0 %v152
    %172 = vmatprep.subr.mxu0 0.0
    %173 = vmatpush1.msra.mxu0 %v153
    %174 = vmatprep.subr.mxu0 0.0
    %175 = vmatpush1.msra.mxu0 %v154
    %176 = vmatprep.subr.mxu0 0.0
    %177 = vmatpush1.msra.mxu0 %v155
    %178 = vmatprep.subr.mxu0 0.0
    %179 = vmatpush1.msra.mxu0 %v156
    %180 = vmatprep.subr.mxu0 0.0
    %181 = vmatpush1.msra.mxu0 %v157
    %182 = vmatprep.subr.mxu0 0.0
    %183 = vmatpush1.msra.mxu0 %v158
    %184 = vmatprep.subr.mxu0 0.0
    %185 = vmatpush1.msra.mxu0 %v159
    %186 = vmatprep.subr.mxu0 0.0
    %187 = vmatpush1.msra.mxu0 %v160
    %188 = vmatprep.subr.mxu0 0.0
    %189 = vmatpush1.msra.mxu0 %v161
    %190 = vmatprep.subr.mxu0 0.0
    %191 = vmatpush1.msra.mxu0 %v162
    %192 = vmatprep.subr.mxu0 0.0
    %193 = vmatpush1.msra.mxu0 %v163
    %194 = vmatprep.subr.mxu0 0.0
    %195 = vmatpush1.msra.mxu0 %v164
    %196 = vmatprep.subr.mxu0 0.0
    %197 = vmatpush1.msra.mxu0 %v165
    %198 = vmatprep.subr.mxu0 0.0
    %199 = vmatpush1.msra.mxu0 0.0
    %200 = vmatprep.subr.mxu0 0.0
    %201 = vmatpush1.msra.mxu0 0.0
    %202 = vmatprep.subr.mxu0 0.0
    %203 = vmatpush1.msra.mxu0 0.0
    %204 = vmatprep.subr.mxu0 0.0
    %205 = vmatpush1.msra.mxu0 0.0
    %206 = vmatprep.subr.mxu0 0.0
    %207 = vmatpush1.msra.mxu0 0.0
    %208 = vmatprep.subr.mxu0 0.0
    %209 = vmatpush1.msra.mxu0 0.0
    %210 = vmatprep.subr.mxu0 0.0
    %211 = vmatpush1.msra.mxu0 0.0
    %212 = vmatprep.subr.mxu0 0.0
    %213 = vmatpush1.msra.mxu0 0.0
    %214 = vmatprep.subr.mxu0 0.0
    %215 = vmatpush1.msra.mxu0 0.0
    %216 = vmatprep.subr.mxu0 0.0
    %217 = vmatpush1.msra.mxu0 0.0
    %218 = vmatprep.subr.mxu0 0.0
    %219 = vmatpush1.msra.mxu0 0.0
    %220 = vmatprep.subr.mxu0 0.0
    %221 = vmatpush1.msra.mxu0 0.0
    %222 = vmatprep.subr.mxu0 0.0
    %223 = vmatpush1.msra.mxu0 0.0
    %224 = vmatprep.subr.mxu0 0.0
    %225 = vmatpush1.msra.mxu0 0.0
    %226 = vmatprep.subr.mxu0 0.0
    %227 = vmatpush1.msra.mxu0 0.0
    %228 = vmatprep.subr.mxu0 0.0
    %229 = vmatpush1.msra.mxu0 0.0
    %230 = vmatprep.mubr.f32.mxu0 0.0
    %231 = vmatmul.mubr.f32.gmra.mrb[0].mxu0 %v146
    %v232 = vpop.f32.mrb[0].mxu0
    %v233 = vadd.f32 0.0, %v232
    %v234 = vpop.f32.mrb[0].mxu0
    %235 = vmatprep.mubr.f32.mxu0 0.0
    %236 = vmatmul.mubr.f32.gmra.mrb[0].mxu0 %v147
    %v237 = vpop.f32.mrb[0].mxu0
    %v238 = vadd.f32 0.0, %v237
    %v239 = vpop.f32.mrb[0].mxu0
    %240 = vdwg.mxu0
    %v241 = vadd.f32 %v148, %v233
    %v242 = vadd.f32 %v149, %v238
    %243 = vst.msk [vmem:[#allocation2] sm:$0xff] %vm48, %v241
    %244 = vst.msk [vmem:[#allocation2 + $0x8] sm:$0xff] %vm48, %v242
    // Predicated region
    $region26: #{tpu_custom_call.1} parent=1 // pred_check
      %p245 = pneg %p21
    $region27: #{tpu_custom_call.1} parent=1 // pred_check_branch
      %247 = sbr.rel (%p245) target = $region29
    $region28: #{tpu_custom_call.1} parent=1 // pred_region
      %v248 = vld [vmem:[#allocation2] sm:$0xff]
      %v249 = vld [vmem:[#allocation2 + $0x8] sm:$0xff]
      %250 = vst.msk [vmem:[#allocation3] sm:$0xff] %vm48, %v248
      %251 = vst.msk [vmem:[#allocation3 + $0x8] sm:$0xff] %vm48, %v249
    $region29: #{tpu_custom_call.1} parent=1 // pred_fallthru
      _
    // Predicated region
    $region30: #{tpu_custom_call.1} parent=1 // pred_check
      _
    $region31: #{tpu_custom_call.1} parent=1 // pred_check_branch
      %253 = sbr.rel (0) target = $region33
    $region32: #{tpu_custom_call.1} parent=1 // pred_region
      %s255 = ssub.s32 256, 256
      %256 = vsyncadd [#allocation4], %s255
      %s257 = sshll.u32 [#allocation3], 4
      %s258 = int_to_ptr.vmem [resolvable:$true] %s257
      %263 = dma.vmem_to_hbm [thread:$0]  %s258, 256, %s5, [#allocation4], 128, 128, 8
    $region33: #{tpu_custom_call.1} parent=1 // pred_fallthru
      _
    // Predicated region
    $region34: #{tpu_custom_call.1} parent=1 // pred_check
      _
    $region35: #{tpu_custom_call.1} parent=1 // pred_check_branch
      %265 = sbr.rel (0) target = $region37
    $region36: #{tpu_custom_call.1} parent=1 // pred_region
      %266 = dma.done [#allocation4], 256
    $region37: #{tpu_custom_call.1} parent=1 // pred_fallthru
      _
    %267 = vsyncpa [#allocation4], 1

</llo_original>
